<compile_context>
chip_gen: v7x
topology: tpu7x:2x2x1
jax: 0.10.0
libtpu: 0.0.40
codegen_flags: <defaults>
</compile_context>

<pallas_src>
import functools
import math

import numpy as np
import jax
import jax.numpy as jnp
from jax.experimental import pallas as pl
from jax.experimental.pallas import tpu as pltpu

NEG_INF = float("-inf")  # aggregation identity of the (max, +) semifield


# ----------------------------- Pallas kernel --------------------------------
def _semi_pool_kernel(x_ref, w_ref, o_ref, acc_ref, *, s, N, W_out):
    """One (batch, output-row, kernel-row-group) grid step.

    x_ref  : (s, s, W_blk, C)  stride-split padded input rows for row-group (i + bm)
    w_ref  : (s, N, C)         structuring-element rows of this row-group
                               (rows with m >= M are -inf -> inert under max)
    o_ref  : (W_out, C)        one output row (written on the last row-group step)
    acc_ref: (W_out, C) f32    running max-plus accumulator (persists over bm axis)
    """
    bm = pl.program_id(2)

    @pl.when(bm == 0)
    def _init():
        acc_ref[...] = jnp.full_like(acc_ref, NEG_INF)

    acc = acc_ref[...]
    w = w_ref[...].astype(jnp.float32)  # cast hoisted out of the unrolled loop
    for pm in range(s):                 # kernel rows inside this row-group (static)
        for n in range(N):              # kernel columns (static)
            bn, pn = n // s, n % s
            # window for all W_out output columns at tap (m = bm*s+pm, n):
            #   x_pad[(i+bm)*s + pm, (j+bn)*s + pn] == x_split[pm, pn, j+bn, :]
            win = x_ref[pm, pn, pl.ds(bn, W_out), :].astype(jnp.float32)  # (W_out, C)
            acc = jnp.maximum(acc, win + w[pm, n][None, :])
    acc_ref[...] = acc

    @pl.when(bm == pl.num_programs(2) - 1)
    def _finalize():
        o_ref[...] = acc.astype(o_ref.dtype)


# ------------------------------- wrapper -------------------------------------
def _output_and_padding(H, W, M, N, s, padding, ceil_mode):
    if padding == "valid":
        H_out = (H - M + (s - 1 if ceil_mode else 0)) // s + 1
        W_out = (W - N + (s - 1 if ceil_mode else 0)) // s + 1
    elif padding == "same":
        H_out = -(H // -s)
        W_out = -(W // -s)
    else:
        raise ValueError('Padding must be either "valid" or "same"')
    pad_h = max((H_out - 1) * s + M - H, 0)
    pad_w = max((W_out - 1) * s + N - W, 0)
    p_l = pad_w // 2
    p_r = pad_w - p_l
    p_t = pad_h // 2
    p_b = pad_h - p_t
    return H_out, W_out, p_t, p_b, p_l, p_r


def semi_pool2d(x, w, *, stride, padding="valid", ceil_mode=False):
    """x: (B, C_in, H, W) NCHW (like PyTorch);  w: (1, C_out, M, N);  C_out == C_in."""
    B, C_in, H, W = x.shape
    B_w, C_out, M, N = w.shape
    assert B_w == 1 and C_out == C_in, "reference .view() requires B_w==1, C_out==C_in"
    assert jnp.issubdtype(x.dtype, jnp.floating), "-inf padding requires a float dtype"
    s = stride

    H_out, W_out, p_t, p_b, p_l, p_r = _output_and_padding(
        H, W, M, N, s, padding, ceil_mode
    )
    bm_max = (M - 1) // s      # number of kernel row-groups - 1
    bn_max = (N - 1) // s
    M_h = bm_max + 1
    H_blk = H_out + bm_max     # rows of the stride-split layout touched by windows
    W_blk = W_out + bn_max
    Hp, Wp = H_blk * s, W_blk * s

    # Rows/cols of the original image beyond what any pooling window touches are
    # cropped; everything else is embedded in a -inf canvas of shape (Hp, Wp).
    H_keep = min(H, Hp - p_t)
    W_keep = min(W, Wp - p_l)
    xp = jnp.pad(
        x[:, :, :H_keep, :W_keep],
        ((0, 0), (0, 0), (p_t, Hp - p_t - H_keep), (p_l, Wp - p_l - W_keep)),
        constant_values=NEG_INF,
    )  # (B, C, Hp, Wp)

    # stride-split, channel-last layout: (B, H_blk, ph, pw, W_blk, C)
    x_l = xp.reshape(B, C_in, H_blk, s, W_blk, s).transpose(0, 2, 3, 5, 4, 1)

    # weight: (1, C, M, N) -> (M_h, s, N, C); rows with m >= M filled with -inf.
    w_t = jnp.transpose(w[0], (1, 2, 0))                       # (M, N, C)
    w_t = jnp.pad(w_t, ((0, M_h * s - M), (0, 0), (0, 0)), constant_values=NEG_INF)
    w_l = w_t.reshape(M_h, s, N, C_out)

    kernel = functools.partial(_semi_pool_kernel, s=s, N=N, W_out=W_out)

    itemsize = jnp.dtype(x.dtype).itemsize
    cost = pl.CostEstimate(
        flops=2 * M * N * B * H_out * W_out * C_out,
        transcendentals=0,
        bytes_accessed=int(
            itemsize
            * (
                B * H_out * M_h * (s * s * W_blk * C_in + s * N * C_out)  # input DMA
                + B * H_out * W_out * C_out                               # output DMA
            )
        ),
    )

    grid_spec = pltpu.PrefetchScalarGridSpec(
        num_scalar_prefetch=0,
        grid=(B, H_out, M_h),
        in_specs=[
            pl.BlockSpec(
                (None, None, s, s, W_blk, C_in),
                lambda b, i, bm: (b, i + bm, 0, 0, 0, 0),
            ),
            pl.BlockSpec(
                (None, s, N, C_out),
                lambda b, i, bm: (bm, 0, 0, 0),
            ),
        ],
        out_specs=pl.BlockSpec(
            (None, None, W_out, C_out),
            lambda b, i, bm: (b, i, 0, 0),
        ),
        scratch_shapes=[pltpu.VMEM((W_out, C_out), jnp.float32)],
    )

    out = pl.pallas_call(
        kernel,
        out_shape=jax.ShapeDtypeStruct((B, H_out, W_out, C_out), x.dtype),
        grid_spec=grid_spec,
        compiler_params=pltpu.CompilerParams(
            dimension_semantics=("parallel", "parallel", "arbitrary"),
        ),
        cost_estimate=cost,
    )(x_l, w_l)

    return jnp.transpose(out, (0, 3, 1, 2))  # NHWC -> NCHW


# ------------------------- module-like container ------------------------------
class SemiPool2d:
    """Max-plus (tropical) semifield pooling; mirrors the PyTorch module."""

    def __init__(self, c_in, c_out, kernel_size, stride, padding="valid",
                 ceil_mode=False, key=None):
        assert c_in == c_out, "this instantiation requires c_in == c_out"
        self.ks = kernel_size
        self.s = stride
        self.padding = padding
        self.ceil_mode = ceil_mode
        key = jax.random.PRNGKey(0) if key is None else key
        # deterministic structuring-element init, shape (1, C_out, ks, ks)
        self.weight = 0.1 * jax.random.normal(
            key, (1, c_out, kernel_size, kernel_size), dtype=jnp.float32
        )

    def __call__(self, x):
        return semi_pool2d(
            x, self.weight, stride=self.s, padding=self.padding,
            ceil_mode=self.ceil_mode,
        )


# --------------------------- pure-JAX reference -------------------------------
def semi_pool2d_ref(x, w, *, stride, padding="valid", ceil_mode=False):
    B, C_in, H, W = x.shape
    _, C_out, M, N = w.shape
    s = stride
    H_out, W_out, p_t, p_b, p_l, p_r = _output_and_padding(
        H, W, M, N, s, padding, ceil_mode
    )
    xp = jnp.pad(
        x, ((0, 0), (0, 0), (p_t, p_b), (p_l, p_r)), constant_values=NEG_INF
    )
    acc = jnp.full((B, C_out, H_out, W_out), NEG_INF, dtype=jnp.float32)
    for m in range(M):
        for n in range(N):
            win = xp[:, :, m : m + (H_out - 1) * s + 1 : s,
                     n : n + (W_out - 1) * s + 1 : s]
            acc = jnp.maximum(acc, win + w[0, :, m, n][None, :, None, None])
    return acc


# ----------------------------------- main --------------------------------------
if __name__ == "__main__":
    key = jax.random.PRNGKey(0)
    kx, kw = jax.random.split(key)

    B, C, H, W = 2, 4, 16, 16
    ks, stride = 3, 2

    x = jax.random.normal(kx, (B, C, H, W), dtype=jnp.float32)

    pool = SemiPool2d(c_in=C, c_out=C, kernel_size=ks, stride=stride,
                      padding="valid", ceil_mode=False, key=kw)

    out = pool(x)
    out = jax.block_until_ready(out)

    ref = semi_pool2d_ref(x, pool.weight, stride=stride, padding="valid",
                          ceil_mode=False)
    ref = jax.block_until_ready(ref)

    assert out.shape == (B, C, 7, 7), out.shape
    np.testing.assert_allclose(np.asarray(out), np.asarray(ref), rtol=1e-6, atol=1e-6)

    print("KERNEL_OK")
</pallas_src>

<mosaic_0001>
module attributes {stable_mosaic.version = 11 : i64} {
  func.func @_semi_pool_kernel(%arg0: i32, %arg1: i32, %arg2: i32, %arg3: memref<1x1x2x2x8x4xf32, #tpu.memory_space<vmem>>, %arg4: memref<1x2x3x4xf32, #tpu.memory_space<vmem>>, %arg5: memref<1x1x7x4xf32, #tpu.memory_space<vmem>>, %arg6: memref<7x4xf32, #tpu.memory_space<vmem>>) attributes {dimension_semantics = [#tpu.dimension_semantics<parallel>, #tpu.dimension_semantics<parallel>, #tpu.dimension_semantics<arbitrary>], iteration_bounds = array<i64: 2, 7, 2>, scalar_prefetch = 0 : i64, scratch_operands = 1 : i64, tpu.core_type = #tpu.core_type<tc>, window_params = [{transform_indices = @transform_0, window_bounds = array<i64: 1, 1, 2, 2, 8, 4>}, {transform_indices = @transform_1, window_bounds = array<i64: 1, 2, 3, 4>}, {transform_indices = @transform_2, window_bounds = array<i64: 1, 1, 7, 4>}]} {
    %c0_i32 = arith.constant 0 : i32
    %0 = arith.cmpi eq, %arg2, %c0_i32 : i32
    %1 = arith.extui %0 : i1 to i32
    %c0_i32_0 = arith.constant 0 : i32
    %2 = arith.cmpi ne, %1, %c0_i32_0 : i32
    scf.if %2 {
      %cst = arith.constant 0xFF800000 : f32
      %58 = vector.broadcast %cst : f32 to vector<7x4xf32>
      %c0_44 = arith.constant 0 : index
      %c0_45 = arith.constant 0 : index
      %59 = vector.load %arg6[%c0_44, %c0_45] : memref<7x4xf32, #tpu.memory_space<vmem>>, vector<7x4xf32>
      tpu.vector_store %arg6[%c0_44, %c0_45], %58 {strides = array<i32>} : memref<7x4xf32, #tpu.memory_space<vmem>>, vector<7x4xf32>,
    } else {
    }
    %c0 = arith.constant 0 : index
    %c0_1 = arith.constant 0 : index
    %3 = vector.load %arg6[%c0, %c0_1] : memref<7x4xf32, #tpu.memory_space<vmem>>, vector<7x4xf32>
    %c0_2 = arith.constant 0 : index
    %c0_3 = arith.constant 0 : index
    %c0_4 = arith.constant 0 : index
    %c0_5 = arith.constant 0 : index
    %4 = vector.load %arg4[%c0_2, %c0_3, %c0_4, %c0_5] : memref<1x2x3x4xf32, #tpu.memory_space<vmem>>, vector<1x2x3x4xf32>
    %5 = vector.shape_cast %4 : vector<1x2x3x4xf32> to vector<2x3x4xf32>
    %c0_6 = arith.constant 0 : index
    %c0_7 = arith.constant 0 : index
    %c0_8 = arith.constant 0 : index
    %c0_9 = arith.constant 0 : index
    %c0_10 = arith.constant 0 : index
    %c0_11 = arith.constant 0 : index
    %6 = vector.load %arg3[%c0_6, %c0_7, %c0_8, %c0_9, %c0_10, %c0_11] : memref<1x1x2x2x8x4xf32, #tpu.memory_space<vmem>>, vector<1x1x1x1x7x4xf32>
    %7 = vector.shape_cast %6 : vector<1x1x1x1x7x4xf32> to vector<7x4xf32>
    %8 = vector.extract_strided_slice %5 {offsets = [0, 0, 0], sizes = [1, 1, 4], strides = [1, 1, 1]} : vector<2x3x4xf32> to vector<1x1x4xf32>
    %9 = vector.shape_cast %8 : vector<1x1x4xf32> to vector<4xf32>
    %10 = vector.shape_cast %9 : vector<4xf32> to vector<1x4xf32>
    %11 = vector.broadcast %10 : vector<1x4xf32> to vector<7x4xf32>
    %12 = arith.addf %7, %11 : vector<7x4xf32>
    %13 = arith.maximumf %3, %12 : vector<7x4xf32>
    %c0_12 = arith.constant 0 : index
    %c0_13 = arith.constant 0 : index
    %c0_14 = arith.constant 0 : index
    %c1 = arith.constant 1 : index
    %c0_15 = arith.constant 0 : index
    %c0_16 = arith.constant 0 : index
    %14 = vector.load %arg3[%c0_12, %c0_13, %c0_14, %c1, %c0_15, %c0_16] : memref<1x1x2x2x8x4xf32, #tpu.memory_space<vmem>>, vector<1x1x1x1x7x4xf32>
    %15 = vector.shape_cast %14 : vector<1x1x1x1x7x4xf32> to vector<7x4xf32>
    %16 = vector.extract_strided_slice %5 {offsets = [0, 1, 0], sizes = [1, 1, 4], strides = [1, 1, 1]} : vector<2x3x4xf32> to vector<1x1x4xf32>
    %17 = vector.shape_cast %16 : vector<1x1x4xf32> to vector<4xf32>
    %18 = vector.shape_cast %17 : vector<4xf32> to vector<1x4xf32>
    %19 = vector.broadcast %18 : vector<1x4xf32> to vector<7x4xf32>
    %20 = arith.addf %15, %19 : vector<7x4xf32>
    %21 = arith.maximumf %13, %20 : vector<7x4xf32>
    %c0_17 = arith.constant 0 : index
    %c0_18 = arith.constant 0 : index
    %c0_19 = arith.constant 0 : index
    %c0_20 = arith.constant 0 : index
    %c1_21 = arith.constant 1 : index
    %c0_22 = arith.constant 0 : index
    %22 = vector.load %arg3[%c0_17, %c0_18, %c0_19, %c0_20, %c1_21, %c0_22] : memref<1x1x2x2x8x4xf32, #tpu.memory_space<vmem>>, vector<1x1x1x1x7x4xf32>
    %23 = vector.shape_cast %22 : vector<1x1x1x1x7x4xf32> to vector<7x4xf32>
    %24 = vector.extract_strided_slice %5 {offsets = [0, 2, 0], sizes = [1, 1, 4], strides = [1, 1, 1]} : vector<2x3x4xf32> to vector<1x1x4xf32>
    %25 = vector.shape_cast %24 : vector<1x1x4xf32> to vector<4xf32>
    %26 = vector.shape_cast %25 : vector<4xf32> to vector<1x4xf32>
    %27 = vector.broadcast %26 : vector<1x4xf32> to vector<7x4xf32>
    %28 = arith.addf %23, %27 : vector<7x4xf32>
    %29 = arith.maximumf %21, %28 : vector<7x4xf32>
    %c0_23 = arith.constant 0 : index
    %c0_24 = arith.constant 0 : index
    %c1_25 = arith.constant 1 : index
    %c0_26 = arith.constant 0 : index
    %c0_27 = arith.constant 0 : index
    %c0_28 = arith.constant 0 : index
    %30 = vector.load %arg3[%c0_23, %c0_24, %c1_25, %c0_26, %c0_27, %c0_28] : memref<1x1x2x2x8x4xf32, #tpu.memory_space<vmem>>, vector<1x1x1x1x7x4xf32>
    %31 = vector.shape_cast %30 : vector<1x1x1x1x7x4xf32> to vector<7x4xf32>
    %32 = vector.extract_strided_slice %5 {offsets = [1, 0, 0], sizes = [1, 1, 4], strides = [1, 1, 1]} : vector<2x3x4xf32> to vector<1x1x4xf32>
    %33 = vector.shape_cast %32 : vector<1x1x4xf32> to vector<4xf32>
    %34 = vector.shape_cast %33 : vector<4xf32> to vector<1x4xf32>
    %35 = vector.broadcast %34 : vector<1x4xf32> to vector<7x4xf32>
    %36 = arith.addf %31, %35 : vector<7x4xf32>
    %37 = arith.maximumf %29, %36 : vector<7x4xf32>
    %c0_29 = arith.constant 0 : index
    %c0_30 = arith.constant 0 : index
    %c1_31 = arith.constant 1 : index
    %c1_32 = arith.constant 1 : index
    %c0_33 = arith.constant 0 : index
    %c0_34 = arith.constant 0 : index
    %38 = vector.load %arg3[%c0_29, %c0_30, %c1_31, %c1_32, %c0_33, %c0_34] : memref<1x1x2x2x8x4xf32, #tpu.memory_space<vmem>>, vector<1x1x1x1x7x4xf32>
    %39 = vector.shape_cast %38 : vector<1x1x1x1x7x4xf32> to vector<7x4xf32>
    %40 = vector.extract_strided_slice %5 {offsets = [1, 1, 0], sizes = [1, 1, 4], strides = [1, 1, 1]} : vector<2x3x4xf32> to vector<1x1x4xf32>
    %41 = vector.shape_cast %40 : vector<1x1x4xf32> to vector<4xf32>
    %42 = vector.shape_cast %41 : vector<4xf32> to vector<1x4xf32>
    %43 = vector.broadcast %42 : vector<1x4xf32> to vector<7x4xf32>
    %44 = arith.addf %39, %43 : vector<7x4xf32>
    %45 = arith.maximumf %37, %44 : vector<7x4xf32>
    %c0_35 = arith.constant 0 : index
    %c0_36 = arith.constant 0 : index
    %c1_37 = arith.constant 1 : index
    %c0_38 = arith.constant 0 : index
    %c1_39 = arith.constant 1 : index
    %c0_40 = arith.constant 0 : index
    %46 = vector.load %arg3[%c0_35, %c0_36, %c1_37, %c0_38, %c1_39, %c0_40] : memref<1x1x2x2x8x4xf32, #tpu.memory_space<vmem>>, vector<1x1x1x1x7x4xf32>
    %47 = vector.shape_cast %46 : vector<1x1x1x1x7x4xf32> to vector<7x4xf32>
    %48 = vector.extract_strided_slice %5 {offsets = [1, 2, 0], sizes = [1, 1, 4], strides = [1, 1, 1]} : vector<2x3x4xf32> to vector<1x1x4xf32>
    %49 = vector.shape_cast %48 : vector<1x1x4xf32> to vector<4xf32>
    %50 = vector.shape_cast %49 : vector<4xf32> to vector<1x4xf32>
    %51 = vector.broadcast %50 : vector<1x4xf32> to vector<7x4xf32>
    %52 = arith.addf %47, %51 : vector<7x4xf32>
    %53 = arith.maximumf %45, %52 : vector<7x4xf32>
    %c0_41 = arith.constant 0 : index
    %c0_42 = arith.constant 0 : index
    %54 = vector.load %arg6[%c0_41, %c0_42] : memref<7x4xf32, #tpu.memory_space<vmem>>, vector<7x4xf32>
    tpu.vector_store %arg6[%c0_41, %c0_42], %53 {strides = array<i32>} : memref<7x4xf32, #tpu.memory_space<vmem>>, vector<7x4xf32>,
    %c1_i32 = arith.constant 1 : i32
    %55 = arith.cmpi eq, %arg2, %c1_i32 : i32
    %56 = arith.extui %55 : i1 to i32
    %c0_i32_43 = arith.constant 0 : i32
    %57 = arith.cmpi ne, %56, %c0_i32_43 : i32
    scf.if %57 {
      %c0_44 = arith.constant 0 : index
      %c0_45 = arith.constant 0 : index
      %c0_46 = arith.constant 0 : index
      %c0_47 = arith.constant 0 : index
      %58 = vector.load %arg5[%c0_44, %c0_45, %c0_46, %c0_47] : memref<1x1x7x4xf32, #tpu.memory_space<vmem>>, vector<1x1x7x4xf32>
      %59 = vector.shape_cast %58 : vector<1x1x7x4xf32> to vector<7x4xf32>
      %60 = vector.shape_cast %53 : vector<7x4xf32> to vector<1x1x7x4xf32>
      tpu.vector_store %arg5[%c0_44, %c0_45, %c0_46, %c0_47], %60 {strides = array<i32>} : memref<1x1x7x4xf32, #tpu.memory_space<vmem>>, vector<1x1x7x4xf32>,
    } else {
    }
    return
  }
  func.func @transform_0(%arg0: i32, %arg1: i32, %arg2: i32) -> (i32, i32, i32, i32, i32, i32) {
    %0 = arith.addi %arg1, %arg2 : i32
    %c0_i32 = arith.constant 0 : i32
    %c0_i32_0 = arith.constant 0 : i32
    %c0_i32_1 = arith.constant 0 : i32
    %c0_i32_2 = arith.constant 0 : i32
    %c0_i32_3 = arith.constant 0 : i32
    return %arg0, %0, %c0_i32, %c0_i32_0, %c0_i32_1, %c0_i32_2 : i32, i32, i32, i32, i32, i32
  }
  func.func @transform_1(%arg0: i32, %arg1: i32, %arg2: i32) -> (i32, i32, i32, i32) {
    %c0_i32 = arith.constant 0 : i32
    %c0_i32_0 = arith.constant 0 : i32
    %c0_i32_1 = arith.constant 0 : i32
    %c0_i32_2 = arith.constant 0 : i32
    return %arg2, %c0_i32, %c0_i32_0, %c0_i32_1 : i32, i32, i32, i32
  }
  func.func @transform_2(%arg0: i32, %arg1: i32, %arg2: i32) -> (i32, i32, i32, i32) {
    %c0_i32 = arith.constant 0 : i32
    %c0_i32_0 = arith.constant 0 : i32
    %c0_i32_1 = arith.constant 0 : i32
    return %arg0, %arg1, %c0_i32, %c0_i32_0 : i32, i32, i32, i32
  }
}

</mosaic_0001>

<llo_original>
// kernel: tpu_custom_call.1
$region0: #{tpu_custom_call.1}
  #allocation0 [shape = 'u32[]', space=smem, size = 0x4, offset = 0x4, fixed_abs, tag = 'smem constant byte address 0x4 - core index']
  #allocation1 [shape = 'u32[144,128]{1,0:T(1,128)}', space=vmem, size = 0x12000, scoped, tag = 'internal scratch']
  #allocation2 [shape = 'f32[7,4]{1,0:T(8,128)}', space=vmem, size = 0x1000, scoped, tag = 'scratch operand']
  %s0 = inlined_call_operand.vmem [shape: f32[2,8,2,2,8,4], index: 0, kind: input, shape index: {}]
  %s1 = inlined_call_operand.vmem [shape: f32[2,2,3,4], index: 1, kind: input, shape index: {}]
  %s2 = inlined_call_operand.vmem [shape: f32[2,7,7,4], index: 2, kind: output, shape index: {}]
  %s3 = sld [smem:[#allocation0]]
  $region49: #{tpu_custom_call.1} parent=0
    _
  %s5 = ssub.s32 1, %s3
  %s6 = scalar_select 0, %s5, %s3
  loop: start=0, step=1, limit=30
  $region2: #{tpu_custom_call.1} parent=0 // loop_pre_header
    _
  $region3: #{tpu_custom_call.1} parent=0 // loop_header
    %s8 = sphi 0, %s12
    %p9 = scmp.ge.s32.totalorder %s8, 30
    %s15 = sphi 0, %s34
    %s16 = sphi 0, %s30
    %s17 = sphi 0, %s26
    %s18 = sphi 0, %s15
    %s19 = sphi 0, %s16
    %s20 = sphi 0, %s17
    %s21 = sphi 0, %s18
    %s22 = sphi 0, %s19
    %s23 = sphi 0, %s20
    %s41 = sphi 0, %s43
    %s44 = sphi 0, %s41
    %s45 = sphi 0, %s44
    %s61 = sphi 0, %s45
    %s67 = sphi 0, %s69
    %s70 = sphi 0, %s67
    %s71 = sphi 0, %s70
    %s87 = sphi 0, %s71
    %s95 = sphi 0, %s97
    %s98 = sphi 0, %s95
    %s99 = sphi 0, %s98
    %s115 = sphi 0, %s99
  $region4: #{tpu_custom_call.1} parent=0 // loop_header_branch
    %11 = sbr.rel (%p9) target = $region8
  $region5: #{tpu_custom_call.1} parent=0 // loop_body
    %s13 = ssub.s32 %s8, 1
    %s14 = ssub.s32 %s8, 2
    %s24 = sadd.s32 1, %s17
    %p25 = scmp.ge.s32.totalorder %s24, 2
    %s26 = scalar_select %p25, 0, %s24
    %s27 = sadd.s32 1, %s16
    %s28 = scalar_select %p25, %s27, %s16
    %p29 = scmp.ge.s32.totalorder %s28, 7
    %s30 = scalar_select %p29, 0, %s28
    %s31 = sadd.s32 1, %s15
    %s32 = scalar_select %p29, %s31, %s15
    %p33 = scmp.ge.s32.totalorder %s32, 2
    %s34 = scalar_select %p33, 0, %s32
    %s35 = sadd.s32 %s16, %s17
    %s36 = sadd.s32 %s30, %s26
    %s37 = ssub.s32 %s15, %s34
    %s38 = ssub.s32 %s35, %s36
    %s39 = sor.u32 %s37, %s38
    %p40 = scmp.eq.s32.totalorder %s39, 0
    %s42 = sadd.s32 %s41, 1
    %s43 = scalar_select %p40, %s41, %s42
    %p46 = pneg %p40
    %p47 = scmp.eq.s32.totalorder %s8, 27
    %p48 = por %p46, %p47
    %p49 = scmp.ne.s32.totalorder %s41, %s44
    %p50 = scmp.eq.s32.totalorder %s8, 0
    %p51 = por %p49, %p50
    %p52 = scmp.ne.s32.totalorder %s41, %s44
    %p53 = scmp.eq.s32.totalorder %s13, 27
    %p54 = por %p52, %p53
    %p55 = scmp.ne.s32.totalorder %s44, %s45
    %p56 = scmp.eq.s32.totalorder %s13, 0
    %p57 = por %p55, %p56
    %p58 = scmp.ne.s32.totalorder %s44, %s45
    %p59 = scmp.eq.s32.totalorder %s14, 27
    %p60 = por %p58, %p59
    %p62 = scmp.ne.s32.totalorder %s45, %s61
    %p63 = scmp.eq.s32.totalorder %s14, 0
    %p64 = por %p62, %p63
    %s65 = ssub.s32 %s17, %s26
    %p66 = scmp.eq.s32.totalorder %s65, 0
    %s68 = sadd.s32 %s67, 1
    %s69 = scalar_select %p66, %s67, %s68
    %p72 = pneg %p66
    %p73 = scmp.eq.s32.totalorder %s8, 27
    %p74 = por %p72, %p73
    %p75 = scmp.ne.s32.totalorder %s67, %s70
    %p76 = scmp.eq.s32.totalorder %s8, 0
    %p77 = por %p75, %p76
    %p78 = scmp.ne.s32.totalorder %s67, %s70
    %p79 = scmp.eq.s32.totalorder %s13, 27
    %p80 = por %p78, %p79
    %p81 = scmp.ne.s32.totalorder %s70, %s71
    %p82 = scmp.eq.s32.totalorder %s13, 0
    %p83 = por %p81, %p82
    %p84 = scmp.ne.s32.totalorder %s70, %s71
    %p85 = scmp.eq.s32.totalorder %s14, 27
    %p86 = por %p84, %p85
    %p88 = scmp.ne.s32.totalorder %s71, %s87
    %p89 = scmp.eq.s32.totalorder %s14, 0
    %p90 = por %p88, %p89
    %s91 = ssub.s32 %s15, %s34
    %s92 = ssub.s32 %s16, %s30
    %s93 = sor.u32 %s91, %s92
    %p94 = scmp.eq.s32.totalorder %s93, 0
    %s96 = sadd.s32 %s95, 1
    %s97 = scalar_select %p94, %s95, %s96
    %p100 = pneg %p94
    %p101 = scmp.eq.s32.totalorder %s8, 27
    %p102 = por %p100, %p101
    %p103 = scmp.ne.s32.totalorder %s95, %s98
    %p104 = scmp.eq.s32.totalorder %s8, 0
    %p105 = por %p103, %p104
    %p106 = scmp.ne.s32.totalorder %s95, %s98
    %p107 = scmp.eq.s32.totalorder %s13, 27
    %p108 = por %p106, %p107
    %p109 = scmp.ne.s32.totalorder %s98, %s99
    %p110 = scmp.eq.s32.totalorder %s13, 0
    %p111 = por %p109, %p110
    %p112 = scmp.ne.s32.totalorder %s98, %s99
    %p113 = scmp.eq.s32.totalorder %s14, 27
    %p114 = por %p112, %p113
    %p116 = scmp.ne.s32.totalorder %s99, %s115
    %p117 = scmp.eq.s32.totalorder %s14, 0
    %p118 = por %p116, %p117
    %p119 = scmp.le.s32.totalorder 1, %s8
    %p120 = scmp.lt.s32.totalorder %s8, 29
    %p121 = pnand %p119, %p120
    %p122 = pneg %p121
    // Predicated region
    $region9: #{tpu_custom_call.1} parent=5 // pred_check
      _
    $region10: #{tpu_custom_call.1} parent=5 // pred_check_branch
      %124 = sbr.rel (%p121) target = $region12
    $region11: #{tpu_custom_call.1} parent=5 // pred_region
      %s125 = ssub.s32 %s8, 1
    $region12: #{tpu_custom_call.1} parent=5 // pred_fallthru
      _
    %p126 = scmp.lt.s32.totalorder %s8, 28
    // Predicated region
    $region13: #{tpu_custom_call.1} parent=5 // pred_check
      %p127 = pneg %p126
    $region14: #{tpu_custom_call.1} parent=5 // pred_check_branch
      %129 = sbr.rel (%p127) target = $region16
    $region15: #{tpu_custom_call.1} parent=5 // pred_region
      // Predicated region
      $region17: #{tpu_custom_call.1} parent=15 // pred_check
        %p130 = pneg %p51
      $region18: #{tpu_custom_call.1} parent=15 // pred_check_branch
        %132 = sbr.rel (%p130) target = $region20
      $region19: #{tpu_custom_call.1} parent=15 // pred_region
        %s133 = sadd.s32 %s16, %s17
        %p134 = scmp.lt.s32.totalorder %s15, 1
        %s135 = scalar_select %p134, %s15, 1
        %p136 = scmp.lt.s32.totalorder %s133, 7
        %s137 = scalar_select %p136, %s133, 7
        %s138 = smul.addr %s137, 4
        %s139 = smul.addr %s135, 32
        %s140 = sadd.s32 %s138, %s139
        %s141 = smul.addr %s140, 8
        %s142 = scalar_lea.vmem %s0, %s141
        %s143 = sadd.s32 %s16, %s17
      $region20: #{tpu_custom_call.1} parent=15 // pred_fallthru
        _
      // Predicated region
      $region21: #{tpu_custom_call.1} parent=15 // pred_check
        %p144 = pneg %p77
      $region22: #{tpu_custom_call.1} parent=15 // pred_check_branch
        %146 = sbr.rel (%p144) target = $region24
      $region23: #{tpu_custom_call.1} parent=15 // pred_region
        %p147 = scmp.lt.s32.totalorder %s17, 1
        %s148 = scalar_select %p147, %s17, 1
        %s149 = smul.addr %s148, 2
        %s150 = smul.addr %s149, 4
        %s151 = scalar_lea.vmem %s1, %s150
      $region24: #{tpu_custom_call.1} parent=15 // pred_fallthru
        _
    $region16: #{tpu_custom_call.1} parent=5 // pred_fallthru
      _
    %p152 = scmp.le.s32.totalorder 1, %s8
    %p153 = scmp.lt.s32.totalorder %s8, 29
    %p154 = pnand %p152, %p153
    %p155 = pneg %p154
    // Predicated region
    $region25: #{tpu_custom_call.1} parent=5 // pred_check
      _
    $region26: #{tpu_custom_call.1} parent=5 // pred_check_branch
      %157 = sbr.rel (%p154) target = $region28
    $region27: #{tpu_custom_call.1} parent=5 // pred_region
      %s158 = ssub.s32 %s8, 1
      %s159 = sadd.s32 %s19, %s20
      %p160 = scmp.lt.s32.totalorder %s18, 1
      %s161 = scalar_select %p160, %s18, 1
      %p162 = scmp.lt.s32.totalorder %s159, 7
      %s163 = scalar_select %p162, %s159, 7
      %s164 = smul.addr %s163, 4
      %s165 = smul.addr %s161, 32
      %s166 = sadd.s32 %s164, %s165
      %s167 = smul.addr %s166, 8
      %s168 = scalar_lea.vmem %s0, %s167
      %p169 = pneg %p57
      %p170 = pneg %p54
      %p171 = scmp.lt.s32.totalorder %s20, 1
      %s172 = scalar_select %p171, %s20, 1
      %s173 = smul.addr %s172, 2
      %s174 = smul.addr %s173, 4
      %s175 = scalar_lea.vmem %s1, %s174
      %p176 = pneg %p83
      %p177 = pneg %p80
      %p178 = pneg %p111
      %p179 = pneg %p108
      %p180 = scmp.lt.s32.totalorder %s18, 1
      %s181 = scalar_select %p180, %s18, 1
      %p182 = scmp.lt.s32.totalorder %s19, 6
      %s183 = scalar_select %p182, %s19, 6
      %s184 = smul.addr %s181, 7
      %s185 = sadd.s32 %s183, %s184
      %s186 = smul.addr %s185, 8
      %s187 = scalar_lea.vmem %s2, %s186
      %s188 = sadd.s32 %s19, %s20
      %p189 = scmp.lt.s32.totalorder %s18, 1
      %s190 = scalar_select %p189, %s18, 1
      %p191 = scmp.lt.s32.totalorder %s188, 7
      %s192 = scalar_select %p191, %s188, 7
      %s193 = smul.addr %s192, 4
      %s194 = smul.addr %s190, 32
      %s195 = sadd.s32 %s193, %s194
      %s196 = smul.addr %s195, 8
      %s197 = scalar_lea.vmem %s0, %s196
      %s198 = sadd.s32 %s19, %s20
      %p199 = scmp.lt.s32.totalorder %s20, 1
      %s200 = scalar_select %p199, %s20, 1
      %s201 = smul.addr %s200, 2
      %s202 = smul.addr %s201, 4
      %s203 = scalar_lea.vmem %s1, %s202
      %p204 = scmp.lt.s32.totalorder %s18, 1
      %s205 = scalar_select %p204, %s18, 1
      %p206 = scmp.lt.s32.totalorder %s19, 6
      %s207 = scalar_select %p206, %s19, 6
      %s208 = smul.addr %s205, 7
      %s209 = sadd.s32 %s207, %s208
      %s210 = smul.addr %s209, 8
      %s211 = scalar_lea.vmem %s2, %s210
      %p212 = scmp.eq.s32.totalorder %s20, 0
      // Predicated region
      $region29: #{tpu_custom_call.1} parent=27 // pred_check
        %p213 = pneg %p212
      $region30: #{tpu_custom_call.1} parent=27 // pred_check_branch
        %215 = sbr.rel (%p213) target = $region32
      $region31: #{tpu_custom_call.1} parent=27 // pred_region
        %vm216 = vcmask 30720
        %217 = vst.msk [vmem:[#allocation2] sm:$0x7f] %vm216, -inf
      $region32: #{tpu_custom_call.1} parent=27 // pred_fallthru
        _
      %v218 = vld [vmem:[#allocation2] sm:$0x7f]
      %v219 = vld [vmem:[%s203] sm:$0x7]
      %v220 = vld [vmem:[%s203 + $0x4] sm:$0x7]
      %v221 = vld [vmem:[%s197] sm:$0x7f]
      %v222 = vlaneseq
      %v223 = vshrl.u32 %v222, 7
      %v224 = vsub.s32 0, %v223
      %v225 = vrot.slane %v219, %v224
      %v226 = vadd.f32 %v221, %v225
      %v227 = vmax.f32 %v218, %v226
      %s228 = scalar_lea.vmem %s197, 8
      %v229 = vld [vmem:[%s228] sm:$0x7f]
      %v230 = vlaneseq
      %v231 = vshrl.u32 %v230, 7
      %v232 = vsub.s32 1, %v231
      %v233 = vrot.slane %v219, %v232
      %v234 = vadd.f32 %v229, %v233
      %v235 = vmax.f32 %v227, %v234
      %v236 = vld [vmem:[%s197 + $0x1] sm:$0x7f]
      %v237 = vlaneseq
      %v238 = vshrl.u32 %v237, 7
      %v239 = vsub.s32 2, %v238
      %v240 = vrot.slane %v219, %v239
      %v241 = vadd.f32 %v236, %v240
      %v242 = vmax.f32 %v235, %v241
      %s243 = scalar_lea.vmem %s197, 16
      %v244 = vld [vmem:[%s243] sm:$0x7f]
      %v245 = vlaneseq
      %v246 = vshrl.u32 %v245, 7
      %v247 = vsub.s32 0, %v246
      %v248 = vrot.slane %v220, %v247
      %v249 = vadd.f32 %v244, %v248
      %v250 = vmax.f32 %v242, %v249
      %s251 = scalar_lea.vmem %s197, 24
      %v252 = vld [vmem:[%s251] sm:$0x7f]
      %v253 = vlaneseq
      %v254 = vshrl.u32 %v253, 7
      %v255 = vsub.s32 1, %v254
      %v256 = vrot.slane %v220, %v255
      %v257 = vadd.f32 %v252, %v256
      %v258 = vmax.f32 %v250, %v257
      %v259 = vld [vmem:[%s243 + $0x1] sm:$0x7f]
      %v260 = vlaneseq
      %v261 = vshrl.u32 %v260, 7
      %v262 = vsub.s32 2, %v261
      %v263 = vrot.slane %v220, %v262
      %v264 = vadd.f32 %v259, %v263
      %v265 = vmax.f32 %v258, %v264
      %vm266 = vcmask 30720
      %267 = vst.msk [vmem:[#allocation2] sm:$0x7f] %vm266, %v265
      %p268 = scmp.eq.s32.totalorder %s20, 1
      // Predicated region
      $region33: #{tpu_custom_call.1} parent=27 // pred_check
        %p269 = pneg %p268
      $region34: #{tpu_custom_call.1} parent=27 // pred_check_branch
        %271 = sbr.rel (%p269) target = $region36
      $region35: #{tpu_custom_call.1} parent=27 // pred_region
        %272 = vst.msk [vmem:[%s211] sm:$0x7f] %vm266, %v265
      $region36: #{tpu_custom_call.1} parent=27 // pred_fallthru
        _
      %p273 = scmp.lt.s32.totalorder %s18, 1
      %s274 = scalar_select %p273, %s18, 1
      %p275 = scmp.lt.s32.totalorder %s19, 6
      %s276 = scalar_select %p275, %s19, 6
      %s277 = smul.addr %s274, 7
      %s278 = sadd.s32 %s276, %s277
      %s279 = smul.addr %s278, 8
      %s280 = scalar_lea.vmem %s2, %s279
      // Predicated region
      $region37: #{tpu_custom_call.1} parent=27 // pred_check
        %p281 = pneg %p108
      $region38: #{tpu_custom_call.1} parent=27 // pred_check_branch
        %283 = sbr.rel (%p281) target = $region40
      $region39: #{tpu_custom_call.1} parent=27 // pred_region
        _
      $region40: #{tpu_custom_call.1} parent=27 // pred_fallthru
        _
    $region28: #{tpu_custom_call.1} parent=5 // pred_fallthru
      _
    %p284 = scmp.le.s32.totalorder 2, %s8
    // Predicated region
    $region41: #{tpu_custom_call.1} parent=5 // pred_check
      %p285 = pneg %p284
    $region42: #{tpu_custom_call.1} parent=5 // pred_check_branch
      %287 = sbr.rel (%p285) target = $region44
    $region43: #{tpu_custom_call.1} parent=5 // pred_region
      %s288 = ssub.s32 %s8, 2
      // Predicated region
      $region45: #{tpu_custom_call.1} parent=43 // pred_check
        %p289 = pneg %p114
      $region46: #{tpu_custom_call.1} parent=43 // pred_check_branch
        %291 = sbr.rel (%p289) target = $region48
      $region47: #{tpu_custom_call.1} parent=43 // pred_region
        %p292 = scmp.lt.s32.totalorder %s21, 1
        %s293 = scalar_select %p292, %s21, 1
        %p294 = scmp.lt.s32.totalorder %s22, 6
        %s295 = scalar_select %p294, %s22, 6
        %s296 = smul.addr %s293, 7
        %s297 = sadd.s32 %s295, %s296
        %s298 = smul.addr %s297, 8
        %s299 = scalar_lea.vmem %s2, %s298
      $region48: #{tpu_custom_call.1} parent=43 // pred_fallthru
        _
    $region44: #{tpu_custom_call.1} parent=5 // pred_fallthru
      _
  $region6: #{tpu_custom_call.1} parent=0 // loop_footer
    %s12 = sadd.s32 1, %s8
  $region7: #{tpu_custom_call.1} parent=0 // loop_footer_branch
    %7 = sbr.rel target = $region3
  $region8: #{tpu_custom_call.1} parent=0 // loop_exit
    _

</llo_original>
